<compile_context>
chip_gen: v6e
topology: v6e:2x2x1
jax: 0.10.0
libtpu: 0.0.40
codegen_flags: <defaults>
</compile_context>

<pallas_src>
import numpy as np
import jax
import jax.numpy as jnp
from jax import lax
from jax.experimental import pallas as pl
from jax.experimental.pallas import tpu as pltpu


def _make_col_sel(H, W):
    """0/1 selection matrix implementing the column leg of the 3x3/s2/p1 max
    pool as a single exact MXU matmul.

    Input lanes are indexed (i, w) = output row i, input column w (the row
    stage has already reduced the three input rows of window i onto that
    lane).  Output lanes are three dense blocks of size OH*OW holding the
    window columns {2j, 2j+1, max(2j-1, 0)}; the j == 0 clamp duplicates an
    in-window column, so a plain elementwise max over the three blocks equals
    the padded pool — no -inf padding and no partial-lane updates needed.
    """
    OH, OW = H // 2, W // 2
    sel = np.zeros((OH * W, 3 * OH * OW), dtype=np.float32)
    j = np.arange(OW)
    for k, tap in enumerate((2 * j, 2 * j + 1, np.maximum(2 * j - 1, 0))):
        for i in range(OH):
            sel[i * W + tap, k * OH * OW + i * OW + j] = 1.0
    return sel


def _pick_batch_block(N, Cin, F, itemsize):
    """Largest batch block B that divides N, keeps >=2 grid steps (v7x has two
    TensorCores) and keeps the double-buffered x block within a small VMEM
    budget (sized for v7x, the tightest generation)."""
    budget = 4 << 20  # bytes for 2x (double-buffered) x blocks
    best = 1
    for cand in range(2, max(N // 2, 1) + 1):
        if N % cand == 0 and 2 * cand * Cin * F * itemsize <= budget:
            best = cand
    return best


def _make_kernel(H, W):
    OH, OW = H // 2, W // 2
    n_out = OH * OW

    def kernel(x_ref, w_ref, sel_ref, b_ref, o_ref, rows_ref):
        # x_ref:    (B, Cin, H*W)     input block, spatial flattened onto lanes
        # w_ref:    (Cout, Cin)       1x1 conv weights
        # sel_ref:  (OH*W, 3*OH*OW)   0/1 column-tap selection matrix
        # b_ref:    (Cout, 1)         conv bias, f32 (applied after pooling)
        # o_ref:    (B, Cout, OH*OW)  lane-dense output block
        # rows_ref: VMEM (Cout, OH*W) f32 scratch: 3-row max, rows kept on lanes
        w = w_ref[...]          # hoisted out of the per-image loop
        sel = sel_ref[...]
        bias = b_ref[...]
        for b in range(x_ref.shape[0]):
            # 1x1 conv: one MXU matmul over channels, lane-dense RHS.
            y = jnp.dot(w, x_ref[b], preferred_element_type=jnp.float32)  # (Cout, H*W)

            # Row stage: rows_ref[:, i*W:(i+1)*W] = max over input rows
            # {2i-1, 2i, 2i+1} (row 2i-1 only exists for i > 0; it is the odd
            # row of the previous pair, reused instead of re-sliced).
            # NOTE: OH is small at these shapes, so a statically unrolled loop
            # is what the scheduler wants; larger H would be tiled via the grid.
            prev_odd = None
            for i in range(OH):
                pair = y[:, 2 * i * W:(2 * i + 2) * W]
                even, odd = pair[:, :W], pair[:, W:]
                rmax = jnp.maximum(even, odd)
                if prev_odd is not None:
                    rmax = jnp.maximum(rmax, prev_odd)
                rows_ref[:, i * W:(i + 1) * W] = rmax
                prev_odd = odd

            # Column stage: ONE exact 0/1 selection matmul gathers the three
            # window columns of every output pixel into three lane-dense
            # OH*OW blocks (LHS fed directly from the 2-D scratch, no reshape).
            rc = jnp.dot(rows_ref[...], sel, preferred_element_type=jnp.float32)
            pooled = jnp.maximum(
                jnp.maximum(rc[:, :n_out], rc[:, n_out:2 * n_out]),
                rc[:, 2 * n_out:])

            # Bias once, after pooling (per-channel constant commutes with max),
            # all in f32; single lane-dense store with one final cast.
            o_ref[b] = (pooled + bias).astype(o_ref.dtype)

    return kernel


def downsample_block(x_nchw, weight, bias, *, mxu_dtype=None):
    """DownsampleBlock forward.

    x_nchw: (N, Cin, H, W); weight: (Cout, Cin, 1, 1); bias: (Cout,).
    mxu_dtype: optional dtype (e.g. jnp.bfloat16) for the conv-matmul inputs
      only (recommended on v6e/v7x when bf16 input rounding is acceptable).
      All pooling / bias math stays f32.
    """
    N, Cin, H, W = x_nchw.shape
    Cout = weight.shape[0]
    if H % 2 or W % 2:
        raise NotImplementedError(
            "downsample_block kernel assumes even spatial dims (H, W).")
    OH, OW = H // 2, W // 2
    F = H * W

    # Free, transpose-less reshapes of contiguous NCHW tensors.
    x_flat = x_nchw.reshape(N, Cin, F)
    w2 = weight.reshape(Cout, Cin)
    if mxu_dtype is not None:
        x_flat = x_flat.astype(mxu_dtype)
        w2 = w2.astype(mxu_dtype)
    b2 = bias.reshape(Cout, 1).astype(jnp.float32)

    # Host-side numpy constant (kept f32: the selection-matmul LHS is the f32
    # conv output, so a narrower sel would just be promoted again anyway).
    sel = _make_col_sel(H, W)

    B = _pick_batch_block(N, Cin, F, x_flat.dtype.itemsize)

    out = pl.pallas_call(
        _make_kernel(H, W),
        out_shape=jax.ShapeDtypeStruct((N, Cout, OH * OW), x_nchw.dtype),
        grid_spec=pltpu.PrefetchScalarGridSpec(
            num_scalar_prefetch=0,
            grid=(N // B,),
            in_specs=[
                pl.BlockSpec((B, Cin, F), lambda n: (n, 0, 0)),
                pl.BlockSpec((Cout, Cin), lambda n: (0, 0)),
                pl.BlockSpec((OH * W, 3 * OH * OW), lambda n: (0, 0)),
                pl.BlockSpec((Cout, 1), lambda n: (0, 0)),
            ],
            out_specs=pl.BlockSpec((B, Cout, OH * OW), lambda n: (n, 0, 0)),
            scratch_shapes=[pltpu.VMEM((Cout, OH * W), jnp.float32)],
        ),
        compiler_params=pltpu.CompilerParams(
            dimension_semantics=("parallel",)),
    )(x_flat, w2, sel, b2)
    return out.reshape(N, Cout, OH, OW)


if __name__ == "__main__":
    key = jax.random.PRNGKey(0)
    kx, kw, kb = jax.random.split(key, 3)

    # Small shapes consistent with the module's forward.
    N, Cin, H, W = 2, 4, 16, 16
    Cout = 8

    x = jax.random.normal(kx, (N, Cin, H, W), dtype=jnp.float32)
    # Deterministic Conv2d-style init (uniform in +/- 1/sqrt(fan_in)).
    bound = 1.0 / (Cin ** 0.5)
    weight = jax.random.uniform(kw, (Cout, Cin, 1, 1), jnp.float32, -bound, bound)
    bias = jax.random.uniform(kb, (Cout,), jnp.float32, -bound, bound)

    out = jax.block_until_ready(downsample_block(x, weight, bias))

    # Pure-JAX reference: exact f32 conv (broadcast-multiply-sum) + bias,
    # followed by a reduce_window max pool with padding=1, stride=2.
    w_ref = weight.reshape(Cout, Cin)
    y_ref = (x[:, None, :, :, :] * w_ref[None, :, :, None, None]).sum(axis=2)
    y_ref = y_ref + bias[None, :, None, None]
    ref = lax.reduce_window(
        y_ref, -jnp.inf, lax.max,
        window_dimensions=(1, 1, 3, 3),
        window_strides=(1, 1, 2, 2),
        padding=((0, 0), (0, 0), (1, 1), (1, 1)))

    assert out.shape == ref.shape == (N, Cout, H // 2, W // 2), (out.shape, ref.shape)
    max_err = float(jnp.max(jnp.abs(out - ref)))
    assert jnp.allclose(out, ref, atol=1e-4, rtol=1e-4), f"mismatch, max err {max_err}"
    print("KERNEL_OK")
</pallas_src>

<mosaic_0001>
module attributes {stable_mosaic.version = 11 : i64} {
  func.func @kernel(%arg0: i32, %arg1: memref<1x4x256xf32, #tpu.memory_space<vmem>>, %arg2: memref<8x4xf32, #tpu.memory_space<vmem>>, %arg3: memref<128x192xf32, #tpu.memory_space<vmem>>, %arg4: memref<8x1xf32, #tpu.memory_space<vmem>>, %arg5: memref<1x8x64xf32, #tpu.memory_space<vmem>>, %arg6: memref<8x128xf32, #tpu.memory_space<vmem>>) attributes {dimension_semantics = [#tpu.dimension_semantics<parallel>], iteration_bounds = array<i64: 2>, scalar_prefetch = 0 : i64, scratch_operands = 1 : i64, tpu.core_type = #tpu.core_type<tc>, window_params = [{transform_indices = @transform_0, window_bounds = array<i64: 1, 4, 256>}, {pipeline_mode = #tpu.pipeline_mode<synchronous>, transform_indices = @transform_1, window_bounds = array<i64: 8, 4>}, {pipeline_mode = #tpu.pipeline_mode<synchronous>, transform_indices = @transform_2, window_bounds = array<i64: 128, 192>}, {pipeline_mode = #tpu.pipeline_mode<synchronous>, transform_indices = @transform_3, window_bounds = array<i64: 8, 1>}, {transform_indices = @transform_4, window_bounds = array<i64: 1, 8, 64>}]} {
    %c0 = arith.constant 0 : index
    %c0_0 = arith.constant 0 : index
    %0 = vector.load %arg2[%c0, %c0_0] : memref<8x4xf32, #tpu.memory_space<vmem>>, vector<8x4xf32>
    %c0_1 = arith.constant 0 : index
    %c0_2 = arith.constant 0 : index
    %1 = vector.load %arg3[%c0_1, %c0_2] : memref<128x192xf32, #tpu.memory_space<vmem>>, vector<128x192xf32>
    %c0_3 = arith.constant 0 : index
    %c0_4 = arith.constant 0 : index
    %2 = vector.load %arg4[%c0_3, %c0_4] : memref<8x1xf32, #tpu.memory_space<vmem>>, vector<8x1xf32>
    %c0_5 = arith.constant 0 : index
    %c0_6 = arith.constant 0 : index
    %c0_7 = arith.constant 0 : index
    %3 = vector.load %arg1[%c0_5, %c0_6, %c0_7] : memref<1x4x256xf32, #tpu.memory_space<vmem>>, vector<1x4x256xf32>
    %4 = vector.shape_cast %3 : vector<1x4x256xf32> to vector<4x256xf32>
    %cst = arith.constant dense<0.000000e+00> : vector<8x256xf32>
    %5 = tpu.matmul %0, %4, %cst {dimension_numbers = #tpu.dot_dimension_numbers<[1], [0], [0], [1], [0, 0, 1, 1], [], []>} : vector<8x4xf32>, vector<4x256xf32>, vector<8x256xf32> -> vector<8x256xf32>
    %6 = vector.extract_strided_slice %5 {offsets = [0, 0], sizes = [8, 32], strides = [1, 1]} : vector<8x256xf32> to vector<8x32xf32>
    %7 = vector.extract_strided_slice %6 {offsets = [0, 0], sizes = [8, 16], strides = [1, 1]} : vector<8x32xf32> to vector<8x16xf32>
    %8 = vector.extract_strided_slice %6 {offsets = [0, 16], sizes = [8, 16], strides = [1, 1]} : vector<8x32xf32> to vector<8x16xf32>
    %9 = arith.maximumf %7, %8 : vector<8x16xf32>
    %c0_8 = arith.constant 0 : index
    %c0_9 = arith.constant 0 : index
    %10 = vector.load %arg6[%c0_8, %c0_9] : memref<8x128xf32, #tpu.memory_space<vmem>>, vector<8x16xf32>
    tpu.vector_store %arg6[%c0_8, %c0_9], %9 {strides = array<i32>} : memref<8x128xf32, #tpu.memory_space<vmem>>, vector<8x16xf32>,
    %11 = vector.extract_strided_slice %5 {offsets = [0, 32], sizes = [8, 32], strides = [1, 1]} : vector<8x256xf32> to vector<8x32xf32>
    %12 = vector.extract_strided_slice %11 {offsets = [0, 0], sizes = [8, 16], strides = [1, 1]} : vector<8x32xf32> to vector<8x16xf32>
    %13 = vector.extract_strided_slice %11 {offsets = [0, 16], sizes = [8, 16], strides = [1, 1]} : vector<8x32xf32> to vector<8x16xf32>
    %14 = arith.maximumf %12, %13 : vector<8x16xf32>
    %15 = arith.maximumf %14, %8 : vector<8x16xf32>
    %c0_10 = arith.constant 0 : index
    %c16 = arith.constant 16 : index
    %16 = vector.load %arg6[%c0_10, %c16] : memref<8x128xf32, #tpu.memory_space<vmem>>, vector<8x16xf32>
    tpu.vector_store %arg6[%c0_10, %c16], %15 {strides = array<i32>} : memref<8x128xf32, #tpu.memory_space<vmem>>, vector<8x16xf32>,
    %17 = vector.extract_strided_slice %5 {offsets = [0, 64], sizes = [8, 32], strides = [1, 1]} : vector<8x256xf32> to vector<8x32xf32>
    %18 = vector.extract_strided_slice %17 {offsets = [0, 0], sizes = [8, 16], strides = [1, 1]} : vector<8x32xf32> to vector<8x16xf32>
    %19 = vector.extract_strided_slice %17 {offsets = [0, 16], sizes = [8, 16], strides = [1, 1]} : vector<8x32xf32> to vector<8x16xf32>
    %20 = arith.maximumf %18, %19 : vector<8x16xf32>
    %21 = arith.maximumf %20, %13 : vector<8x16xf32>
    %c0_11 = arith.constant 0 : index
    %c32 = arith.constant 32 : index
    %22 = vector.load %arg6[%c0_11, %c32] : memref<8x128xf32, #tpu.memory_space<vmem>>, vector<8x16xf32>
    tpu.vector_store %arg6[%c0_11, %c32], %21 {strides = array<i32>} : memref<8x128xf32, #tpu.memory_space<vmem>>, vector<8x16xf32>,
    %23 = vector.extract_strided_slice %5 {offsets = [0, 96], sizes = [8, 32], strides = [1, 1]} : vector<8x256xf32> to vector<8x32xf32>
    %24 = vector.extract_strided_slice %23 {offsets = [0, 0], sizes = [8, 16], strides = [1, 1]} : vector<8x32xf32> to vector<8x16xf32>
    %25 = vector.extract_strided_slice %23 {offsets = [0, 16], sizes = [8, 16], strides = [1, 1]} : vector<8x32xf32> to vector<8x16xf32>
    %26 = arith.maximumf %24, %25 : vector<8x16xf32>
    %27 = arith.maximumf %26, %19 : vector<8x16xf32>
    %c0_12 = arith.constant 0 : index
    %c48 = arith.constant 48 : index
    %28 = vector.load %arg6[%c0_12, %c48] : memref<8x128xf32, #tpu.memory_space<vmem>>, vector<8x16xf32>
    tpu.vector_store %arg6[%c0_12, %c48], %27 {strides = array<i32>} : memref<8x128xf32, #tpu.memory_space<vmem>>, vector<8x16xf32>,
    %29 = vector.extract_strided_slice %5 {offsets = [0, 128], sizes = [8, 32], strides = [1, 1]} : vector<8x256xf32> to vector<8x32xf32>
    %30 = vector.extract_strided_slice %29 {offsets = [0, 0], sizes = [8, 16], strides = [1, 1]} : vector<8x32xf32> to vector<8x16xf32>
    %31 = vector.extract_strided_slice %29 {offsets = [0, 16], sizes = [8, 16], strides = [1, 1]} : vector<8x32xf32> to vector<8x16xf32>
    %32 = arith.maximumf %30, %31 : vector<8x16xf32>
    %33 = arith.maximumf %32, %25 : vector<8x16xf32>
    %c0_13 = arith.constant 0 : index
    %c64 = arith.constant 64 : index
    %34 = vector.load %arg6[%c0_13, %c64] : memref<8x128xf32, #tpu.memory_space<vmem>>, vector<8x16xf32>
    tpu.vector_store %arg6[%c0_13, %c64], %33 {strides = array<i32>} : memref<8x128xf32, #tpu.memory_space<vmem>>, vector<8x16xf32>,
    %35 = vector.extract_strided_slice %5 {offsets = [0, 160], sizes = [8, 32], strides = [1, 1]} : vector<8x256xf32> to vector<8x32xf32>
    %36 = vector.extract_strided_slice %35 {offsets = [0, 0], sizes = [8, 16], strides = [1, 1]} : vector<8x32xf32> to vector<8x16xf32>
    %37 = vector.extract_strided_slice %35 {offsets = [0, 16], sizes = [8, 16], strides = [1, 1]} : vector<8x32xf32> to vector<8x16xf32>
    %38 = arith.maximumf %36, %37 : vector<8x16xf32>
    %39 = arith.maximumf %38, %31 : vector<8x16xf32>
    %c0_14 = arith.constant 0 : index
    %c80 = arith.constant 80 : index
    %40 = vector.load %arg6[%c0_14, %c80] : memref<8x128xf32, #tpu.memory_space<vmem>>, vector<8x16xf32>
    tpu.vector_store %arg6[%c0_14, %c80], %39 {strides = array<i32>} : memref<8x128xf32, #tpu.memory_space<vmem>>, vector<8x16xf32>,
    %41 = vector.extract_strided_slice %5 {offsets = [0, 192], sizes = [8, 32], strides = [1, 1]} : vector<8x256xf32> to vector<8x32xf32>
    %42 = vector.extract_strided_slice %41 {offsets = [0, 0], sizes = [8, 16], strides = [1, 1]} : vector<8x32xf32> to vector<8x16xf32>
    %43 = vector.extract_strided_slice %41 {offsets = [0, 16], sizes = [8, 16], strides = [1, 1]} : vector<8x32xf32> to vector<8x16xf32>
    %44 = arith.maximumf %42, %43 : vector<8x16xf32>
    %45 = arith.maximumf %44, %37 : vector<8x16xf32>
    %c0_15 = arith.constant 0 : index
    %c96 = arith.constant 96 : index
    %46 = vector.load %arg6[%c0_15, %c96] : memref<8x128xf32, #tpu.memory_space<vmem>>, vector<8x16xf32>
    tpu.vector_store %arg6[%c0_15, %c96], %45 {strides = array<i32>} : memref<8x128xf32, #tpu.memory_space<vmem>>, vector<8x16xf32>,
    %47 = vector.extract_strided_slice %5 {offsets = [0, 224], sizes = [8, 32], strides = [1, 1]} : vector<8x256xf32> to vector<8x32xf32>
    %48 = vector.extract_strided_slice %47 {offsets = [0, 0], sizes = [8, 16], strides = [1, 1]} : vector<8x32xf32> to vector<8x16xf32>
    %49 = vector.extract_strided_slice %47 {offsets = [0, 16], sizes = [8, 16], strides = [1, 1]} : vector<8x32xf32> to vector<8x16xf32>
    %50 = arith.maximumf %48, %49 : vector<8x16xf32>
    %51 = arith.maximumf %50, %43 : vector<8x16xf32>
    %c0_16 = arith.constant 0 : index
    %c112 = arith.constant 112 : index
    %52 = vector.load %arg6[%c0_16, %c112] : memref<8x128xf32, #tpu.memory_space<vmem>>, vector<8x16xf32>
    tpu.vector_store %arg6[%c0_16, %c112], %51 {strides = array<i32>} : memref<8x128xf32, #tpu.memory_space<vmem>>, vector<8x16xf32>,
    %c0_17 = arith.constant 0 : index
    %c0_18 = arith.constant 0 : index
    %53 = vector.load %arg6[%c0_17, %c0_18] : memref<8x128xf32, #tpu.memory_space<vmem>>, vector<8x128xf32>
    %cst_19 = arith.constant dense<0.000000e+00> : vector<8x192xf32>
    %54 = tpu.matmul %53, %1, %cst_19 {dimension_numbers = #tpu.dot_dimension_numbers<[1], [0], [0], [1], [0, 0, 1, 1], [], []>} : vector<8x128xf32>, vector<128x192xf32>, vector<8x192xf32> -> vector<8x192xf32>
    %55 = vector.extract_strided_slice %54 {offsets = [0, 0], sizes = [8, 64], strides = [1, 1]} : vector<8x192xf32> to vector<8x64xf32>
    %56 = vector.extract_strided_slice %54 {offsets = [0, 64], sizes = [8, 64], strides = [1, 1]} : vector<8x192xf32> to vector<8x64xf32>
    %57 = arith.maximumf %55, %56 : vector<8x64xf32>
    %58 = vector.extract_strided_slice %54 {offsets = [0, 128], sizes = [8, 64], strides = [1, 1]} : vector<8x192xf32> to vector<8x64xf32>
    %59 = arith.maximumf %57, %58 : vector<8x64xf32>
    %60 = vector.broadcast %2 : vector<8x1xf32> to vector<8x64xf32>
    %61 = arith.addf %59, %60 : vector<8x64xf32>
    %c0_20 = arith.constant 0 : index
    %c0_21 = arith.constant 0 : index
    %c0_22 = arith.constant 0 : index
    %62 = vector.load %arg5[%c0_20, %c0_21, %c0_22] : memref<1x8x64xf32, #tpu.memory_space<vmem>>, vector<1x8x64xf32>
    %63 = vector.shape_cast %62 : vector<1x8x64xf32> to vector<8x64xf32>
    %64 = vector.shape_cast %61 : vector<8x64xf32> to vector<1x8x64xf32>
    tpu.vector_store %arg5[%c0_20, %c0_21, %c0_22], %64 {strides = array<i32>} : memref<1x8x64xf32, #tpu.memory_space<vmem>>, vector<1x8x64xf32>,
    return
  }
  func.func @transform_0(%arg0: i32) -> (i32, i32, i32) {
    %c0_i32 = arith.constant 0 : i32
    %c0_i32_0 = arith.constant 0 : i32
    %c0_i32_1 = arith.constant 0 : i32
    return %arg0, %c0_i32, %c0_i32_0 : i32, i32, i32
  }
  func.func @transform_1(%arg0: i32) -> (i32, i32) {
    %c0_i32 = arith.constant 0 : i32
    %c0_i32_0 = arith.constant 0 : i32
    %c0_i32_1 = arith.constant 0 : i32
    return %c0_i32, %c0_i32_0 : i32, i32
  }
  func.func @transform_2(%arg0: i32) -> (i32, i32) {
    %c0_i32 = arith.constant 0 : i32
    %c0_i32_0 = arith.constant 0 : i32
    %c0_i32_1 = arith.constant 0 : i32
    return %c0_i32, %c0_i32_0 : i32, i32
  }
  func.func @transform_3(%arg0: i32) -> (i32, i32) {
    %c0_i32 = arith.constant 0 : i32
    %c0_i32_0 = arith.constant 0 : i32
    %c0_i32_1 = arith.constant 0 : i32
    return %c0_i32, %c0_i32_0 : i32, i32
  }
  func.func @transform_4(%arg0: i32) -> (i32, i32, i32) {
    %c0_i32 = arith.constant 0 : i32
    %c0_i32_0 = arith.constant 0 : i32
    %c0_i32_1 = arith.constant 0 : i32
    return %arg0, %c0_i32, %c0_i32_0 : i32, i32, i32
  }
}

</mosaic_0001>

<llo_original>
// kernel: tpu_custom_call.1
$region0: #{tpu_custom_call.1}
  #allocation0 [shape = 'u32[]', space=smem, size = 0x4, offset = 0x4, fixed_abs, tag = 'smem constant byte address 0x4 - core index']
  #allocation1 [shape = 'u32[144,128]{1,0:T(1,128)}', space=vmem, size = 0x12000, scoped, tag = 'internal scratch']
  #allocation2 [shape = 'f32[8,128]{1,0:T(8,128)}', space=vmem, size = 0x1000, scoped, tag = 'scratch operand']
  %s0 = inlined_call_operand.vmem [shape: f32[2,4,256], index: 0, kind: input, shape index: {}]
  %s1 = inlined_call_operand.vmem [shape: f32[8,4], index: 1, kind: input, shape index: {}]
  %s2 = inlined_call_operand.vmem [shape: f32[128,192], index: 2, kind: input, shape index: {}]
  %s3 = inlined_call_operand.vmem [shape: f32[8,1], index: 3, kind: input, shape index: {}]
  %s4 = inlined_call_operand.hbm [shape: f32[2,8,64], index: 4, kind: output, shape index: {}]
  %s5 = sld [smem:[#allocation0]]
  $region49: #{tpu_custom_call.1} parent=0
    _
  %s7 = ssub.s32 1, %s5
  %s8 = scalar_select 0, %s7, %s5
  $region1: #{tpu_custom_call.1} parent=0
    #allocation3 [shape = 'u8[8192]{0}', space=vmem, size = 0x2000, scoped, tag = 'output window, operand 0']
    #allocation4 [shape = 's32[2]{0}', space=sflag, size = 0x8, scoped, tag = 'scoped memory for tpu_custom_call.1']
    %9 = vsyncpa [#allocation4], 0
    %s10 = scalar_lea.sflag [#allocation4], 1
    %11 = vsyncpa %s10, 0
    loop: start=0, step=1, limit=4
    $region2: #{tpu_custom_call.1} parent=1 // loop_pre_header
      _
    $region3: #{tpu_custom_call.1} parent=1 // loop_header
      %s13 = sphi 0, %s17
      %p14 = scmp.ge.s32.totalorder %s13, 4
      %s23 = sphi 0, %s25
      %s26 = sphi 0, %s23
      %s27 = sphi 0, %s26
      %s43 = sphi 0, %s27
      %s47 = sphi 0, %s47
      %s49 = sphi 0, %s47
      %s50 = sphi 0, %s49
      %s64 = sphi 0, %s50
      %s68 = sphi 0, %s68
      %s70 = sphi 0, %s68
      %s71 = sphi 0, %s70
      %s85 = sphi 0, %s71
      %s89 = sphi 0, %s89
      %s91 = sphi 0, %s89
      %s92 = sphi 0, %s91
      %s106 = sphi 0, %s92
      %s112 = sphi 0, %s114
      %s115 = sphi 0, %s112
      %s116 = sphi 0, %s115
      %s132 = sphi 0, %s116
    $region4: #{tpu_custom_call.1} parent=1 // loop_header_branch
      %16 = sbr.rel (%p14) target = $region8
    $region5: #{tpu_custom_call.1} parent=1 // loop_body
      %s18 = ssub.s32 %s13, 1
      %s19 = ssub.s32 %s13, 2
      %s20 = sadd.s32 %s13, 1
      %s21 = ssub.s32 %s13, %s20
      %p22 = scmp.eq.s32.totalorder %s21, 0
      %s24 = sadd.s32 %s23, 1
      %s25 = scalar_select %p22, %s23, %s24
      %p28 = pneg %p22
      %p29 = scmp.eq.s32.totalorder %s13, 1
      %p30 = por %p28, %p29
      %p31 = scmp.ne.s32.totalorder %s23, %s26
      %p32 = scmp.eq.s32.totalorder %s13, 0
      %p33 = por %p31, %p32
      %p34 = scmp.ne.s32.totalorder %s23, %s26
      %p35 = scmp.eq.s32.totalorder %s18, 1
      %p36 = por %p34, %p35
      %p37 = scmp.ne.s32.totalorder %s26, %s27
      %p38 = scmp.eq.s32.totalorder %s18, 0
      %p39 = por %p37, %p38
      %p40 = scmp.ne.s32.totalorder %s26, %s27
      %p41 = scmp.eq.s32.totalorder %s19, 1
      %p42 = por %p40, %p41
      %p44 = scmp.ne.s32.totalorder %s27, %s43
      %p45 = scmp.eq.s32.totalorder %s19, 0
      %p46 = por %p44, %p45
      %s48 = sadd.s32 %s47, 1
      %p51 = scmp.eq.s32.totalorder %s13, 1
      %p52 = scmp.ne.s32.totalorder %s47, %s49
      %p53 = scmp.eq.s32.totalorder %s13, 0
      %p54 = por %p52, %p53
      %p55 = scmp.ne.s32.totalorder %s47, %s49
      %p56 = scmp.eq.s32.totalorder %s18, 1
      %p57 = por %p55, %p56
      %p58 = scmp.ne.s32.totalorder %s49, %s50
      %p59 = scmp.eq.s32.totalorder %s18, 0
      %p60 = por %p58, %p59
      %p61 = scmp.ne.s32.totalorder %s49, %s50
      %p62 = scmp.eq.s32.totalorder %s19, 1
      %p63 = por %p61, %p62
      %p65 = scmp.ne.s32.totalorder %s50, %s64
      %p66 = scmp.eq.s32.totalorder %s19, 0
      %p67 = por %p65, %p66
      %s69 = sadd.s32 %s68, 1
      %p72 = scmp.eq.s32.totalorder %s13, 1
      %p73 = scmp.ne.s32.totalorder %s68, %s70
      %p74 = scmp.eq.s32.totalorder %s13, 0
      %p75 = por %p73, %p74
      %p76 = scmp.ne.s32.totalorder %s68, %s70
      %p77 = scmp.eq.s32.totalorder %s18, 1
      %p78 = por %p76, %p77
      %p79 = scmp.ne.s32.totalorder %s70, %s71
      %p80 = scmp.eq.s32.totalorder %s18, 0
      %p81 = por %p79, %p80
      %p82 = scmp.ne.s32.totalorder %s70, %s71
      %p83 = scmp.eq.s32.totalorder %s19, 1
      %p84 = por %p82, %p83
      %p86 = scmp.ne.s32.totalorder %s71, %s85
      %p87 = scmp.eq.s32.totalorder %s19, 0
      %p88 = por %p86, %p87
      %s90 = sadd.s32 %s89, 1
      %p93 = scmp.eq.s32.totalorder %s13, 1
      %p94 = scmp.ne.s32.totalorder %s89, %s91
      %p95 = scmp.eq.s32.totalorder %s13, 0
      %p96 = por %p94, %p95
      %p97 = scmp.ne.s32.totalorder %s89, %s91
      %p98 = scmp.eq.s32.totalorder %s18, 1
      %p99 = por %p97, %p98
      %p100 = scmp.ne.s32.totalorder %s91, %s92
      %p101 = scmp.eq.s32.totalorder %s18, 0
      %p102 = por %p100, %p101
      %p103 = scmp.ne.s32.totalorder %s91, %s92
      %p104 = scmp.eq.s32.totalorder %s19, 1
      %p105 = por %p103, %p104
      %p107 = scmp.ne.s32.totalorder %s92, %s106
      %p108 = scmp.eq.s32.totalorder %s19, 0
      %p109 = por %p107, %p108
      %s110 = ssub.s32 %s13, %s20
      %p111 = scmp.eq.s32.totalorder %s110, 0
      %s113 = sadd.s32 %s112, 1
      %s114 = scalar_select %p111, %s112, %s113
      %p117 = pneg %p111
      %p118 = scmp.eq.s32.totalorder %s13, 1
      %p119 = por %p117, %p118
      %p120 = scmp.ne.s32.totalorder %s112, %s115
      %p121 = scmp.eq.s32.totalorder %s13, 0
      %p122 = por %p120, %p121
      %p123 = scmp.ne.s32.totalorder %s112, %s115
      %p124 = scmp.eq.s32.totalorder %s18, 1
      %p125 = por %p123, %p124
      %p126 = scmp.ne.s32.totalorder %s115, %s116
      %p127 = scmp.eq.s32.totalorder %s18, 0
      %p128 = por %p126, %p127
      %p129 = scmp.ne.s32.totalorder %s115, %s116
      %p130 = scmp.eq.s32.totalorder %s19, 1
      %p131 = por %p129, %p130
      %p133 = scmp.ne.s32.totalorder %s116, %s132
      %p134 = scmp.eq.s32.totalorder %s19, 0
      %p135 = por %p133, %p134
      %p136 = scmp.le.s32.totalorder 1, %s13
      %p137 = scmp.lt.s32.totalorder %s13, 3
      %p138 = pnand %p136, %p137
      %p139 = pneg %p138
      // Predicated region
      $region9: #{tpu_custom_call.1} parent=5 // pred_check
        _
      $region10: #{tpu_custom_call.1} parent=5 // pred_check_branch
        %141 = sbr.rel (%p138) target = $region12
      $region11: #{tpu_custom_call.1} parent=5 // pred_region
        %s142 = ssub.s32 %s13, 1
        // Predicated region
        $region13: #{tpu_custom_call.1} parent=11 // pred_check
          %p143 = pneg %p60
        $region14: #{tpu_custom_call.1} parent=11 // pred_check_branch
          %145 = sbr.rel (%p143) target = $region16
        $region15: #{tpu_custom_call.1} parent=11 // pred_region
          _
        $region16: #{tpu_custom_call.1} parent=11 // pred_fallthru
          _
        // Predicated region
        $region17: #{tpu_custom_call.1} parent=11 // pred_check
          %p146 = pneg %p81
        $region18: #{tpu_custom_call.1} parent=11 // pred_check_branch
          %148 = sbr.rel (%p146) target = $region20
        $region19: #{tpu_custom_call.1} parent=11 // pred_region
          _
        $region20: #{tpu_custom_call.1} parent=11 // pred_fallthru
          _
        // Predicated region
        $region21: #{tpu_custom_call.1} parent=11 // pred_check
          %p149 = pneg %p102
        $region22: #{tpu_custom_call.1} parent=11 // pred_check_branch
          %151 = sbr.rel (%p149) target = $region24
        $region23: #{tpu_custom_call.1} parent=11 // pred_region
          _
        $region24: #{tpu_custom_call.1} parent=11 // pred_fallthru
          _
      $region12: #{tpu_custom_call.1} parent=5 // pred_fallthru
        _
      %p152 = scmp.lt.s32.totalorder %s13, 2
      // Predicated region
      $region25: #{tpu_custom_call.1} parent=5 // pred_check
        %p153 = pneg %p152
      $region26: #{tpu_custom_call.1} parent=5 // pred_check_branch
        %155 = sbr.rel (%p153) target = $region28
      $region27: #{tpu_custom_call.1} parent=5 // pred_region
        // Predicated region
        $region29: #{tpu_custom_call.1} parent=27 // pred_check
          %p156 = pneg %p33
        $region30: #{tpu_custom_call.1} parent=27 // pred_check_branch
          %158 = sbr.rel (%p156) target = $region32
        $region31: #{tpu_custom_call.1} parent=27 // pred_region
          %p159 = scmp.lt.s32.totalorder %s13, 1
          %s160 = scalar_select %p159, %s13, 1
          %s161 = smul.addr %s160, 2
          %s162 = smul.addr %s161, 4
          %s163 = scalar_lea.vmem %s0, %s162
        $region32: #{tpu_custom_call.1} parent=27 // pred_fallthru
          _
      $region28: #{tpu_custom_call.1} parent=5 // pred_fallthru
        _
      %p164 = scmp.le.s32.totalorder 1, %s13
      %p165 = scmp.lt.s32.totalorder %s13, 3
      %p166 = pnand %p164, %p165
      %p167 = pneg %p166
      // Predicated region
      $region33: #{tpu_custom_call.1} parent=5 // pred_check
        _
      $region34: #{tpu_custom_call.1} parent=5 // pred_check_branch
        %169 = sbr.rel (%p166) target = $region36
      $region35: #{tpu_custom_call.1} parent=5 // pred_region
        %s170 = ssub.s32 %s13, 1
        %p171 = scmp.lt.s32.totalorder %s18, 1
        %s172 = scalar_select %p171, %s18, 1
        %s173 = smul.addr %s172, 2
        %s174 = smul.addr %s173, 4
        %s175 = scalar_lea.vmem %s0, %s174
        %p176 = pneg %p39
        %p177 = pneg %p36
        %p178 = pneg %p60
        %p179 = pneg %p57
        %p180 = pneg %p81
        %p181 = pneg %p78
        %p182 = pneg %p102
        %p183 = pneg %p99
        %p184 = pneg %p128
        %p185 = pneg %p125
        %s186 = sand.u32 %s115, 1
        %s187 = scalar_lea.sflag [#allocation4], %s186
        %s188 = sand.u32 %s115, 1
        %s189 = smul.addr %s188, 8
        %s190 = scalar_lea.vmem [#allocation3], %s189
        %p191 = scmp.lt.s32.totalorder %s18, 1
        %s192 = scalar_select %p191, %s18, 1
        %s193 = smul.addr %s192, 2
        %s194 = smul.addr %s193, 4
        %s195 = scalar_lea.vmem %s0, %s194
        %v196 = vld [vmem:[%s1] sm:$0xff]
        %v197 = vld [vmem:[%s2] sm:$0xff]
        %v198 = vld [vmem:[%s2 + $0x8] sm:$0xff]
        %v199 = vld [vmem:[%s2 + $0x10] sm:$0xff]
        %v200 = vld [vmem:[%s2 + $0x18] sm:$0xff]
        %v201 = vld [vmem:[%s2 + $0x20] sm:$0xff]
        %v202 = vld [vmem:[%s2 + $0x28] sm:$0xff]
        %v203 = vld [vmem:[%s2 + $0x30] sm:$0xff]
        %v204 = vld [vmem:[%s2 + $0x38] sm:$0xff]
        %v205 = vld [vmem:[%s2 + $0x40] sm:$0xff]
        %v206 = vld [vmem:[%s2 + $0x48] sm:$0xff]
        %v207 = vld [vmem:[%s2 + $0x50] sm:$0xff]
        %v208 = vld [vmem:[%s2 + $0x58] sm:$0xff]
        %v209 = vld [vmem:[%s2 + $0x60] sm:$0xff]
        %v210 = vld [vmem:[%s2 + $0x68] sm:$0xff]
        %v211 = vld [vmem:[%s2 + $0x70] sm:$0xff]
        %v212 = vld [vmem:[%s2 + $0x78] sm:$0xff]
        %v213 = vld [vmem:[%s2 + $0x80] sm:$0xff]
        %v214 = vld [vmem:[%s2 + $0x88] sm:$0xff]
        %v215 = vld [vmem:[%s2 + $0x90] sm:$0xff]
        %v216 = vld [vmem:[%s2 + $0x98] sm:$0xff]
        %v217 = vld [vmem:[%s2 + $0xa0] sm:$0xff]
        %v218 = vld [vmem:[%s2 + $0xa8] sm:$0xff]
        %v219 = vld [vmem:[%s2 + $0xb0] sm:$0xff]
        %v220 = vld [vmem:[%s2 + $0xb8] sm:$0xff]
        %v221 = vld [vmem:[%s2 + $0xc0] sm:$0xff]
        %v222 = vld [vmem:[%s2 + $0xc8] sm:$0xff]
        %v223 = vld [vmem:[%s2 + $0xd0] sm:$0xff]
        %v224 = vld [vmem:[%s2 + $0xd8] sm:$0xff]
        %v225 = vld [vmem:[%s2 + $0xe0] sm:$0xff]
        %v226 = vld [vmem:[%s2 + $0xe8] sm:$0xff]
        %v227 = vld [vmem:[%s2 + $0xf0] sm:$0xff]
        %v228 = vld [vmem:[%s2 + $0xf8] sm:$0xff]
        %v229 = vld [vmem:[%s3] sm:$0xff]
        %v230 = vld [vmem:[%s195] sm:$0xff]
        %v232 = vcombine.high %v230, %v230
        %vm233 = vcmask 31744
        %v235 = vsel %vm233, %v196, 0
        %vm237 = vcmask 1043456
        %v238 = vsel %vm237, %v230, 0
        %v240 = vsel %vm237, %v232, 0
        %242 = vmatprep.subr.mxu0 0.0
        %243 = vmatpush1.msra.mxu0 0.0
        %244 = vmatprep.subr.mxu0 0.0
        %245 = vmatpush1.msra.mxu0 0.0
        %246 = vmatprep.subr.mxu0 0.0
        %247 = vmatpush1.msra.mxu0 0.0
        %248 = vmatprep.subr.mxu0 0.0
        %249 = vmatpush1.msra.mxu0 0.0
        %250 = vmatprep.subr.mxu0 0.0
        %251 = vmatpush1.msra.mxu0 0.0
        %252 = vmatprep.subr.mxu0 0.0
        %253 = vmatpush1.msra.mxu0 0.0
        %254 = vmatprep.subr.mxu0 0.0
        %255 = vmatpush1.msra.mxu0 0.0
        %256 = vmatprep.subr.mxu0 0.0
        %257 = vmatpush1.msra.mxu0 0.0
        %258 = vmatprep.subr.mxu0 0.0
        %259 = vmatpush1.msra.mxu0 0.0
        %260 = vmatprep.subr.mxu0 0.0
        %261 = vmatpush1.msra.mxu0 0.0
        %262 = vmatprep.subr.mxu0 0.0
        %263 = vmatpush1.msra.mxu0 0.0
        %264 = vmatprep.subr.mxu0 0.0
        %265 = vmatpush1.msra.mxu0 0.0
        %266 = vmatprep.subr.mxu0 0.0
        %267 = vmatpush1.msra.mxu0 0.0
        %268 = vmatprep.subr.mxu0 0.0
        %269 = vmatpush1.msra.mxu0 0.0
        %270 = vmatprep.subr.mxu0 0.0
        %271 = vmatpush1.msra.mxu0 0.0
        %272 = vmatprep.subr.mxu0 %v240
        %273 = vmatpush1.msra.mxu0 %v238
        %274 = vmatprep.subr.mxu0 0.0
        %275 = vmatpush2.msra.mxu0 0.0
        %276 = vmatprep.subr.mxu0 0.0
        %277 = vmatpush2.msra.mxu0 0.0
        %278 = vmatprep.subr.mxu0 0.0
        %279 = vmatpush2.msra.mxu0 0.0
        %280 = vmatprep.subr.mxu0 0.0
        %281 = vmatpush2.msra.mxu0 0.0
        %282 = vmatprep.subr.mxu0 0.0
        %283 = vmatpush2.msra.mxu0 0.0
        %284 = vmatprep.subr.mxu0 0.0
        %285 = vmatpush2.msra.mxu0 0.0
        %286 = vmatprep.subr.mxu0 0.0
        %287 = vmatpush2.msra.mxu0 0.0
        %288 = vmatprep.subr.mxu0 0.0
        %289 = vmatpush2.msra.mxu0 0.0
        %290 = vmatprep.subr.mxu0 0.0
        %291 = vmatpush2.msra.mxu0 0.0
        %292 = vmatprep.subr.mxu0 0.0
        %293 = vmatpush2.msra.mxu0 0.0
        %294 = vmatprep.subr.mxu0 0.0
        %295 = vmatpush2.msra.mxu0 0.0
        %296 = vmatprep.subr.mxu0 0.0
        %297 = vmatpush2.msra.mxu0 0.0
        %298 = vmatprep.subr.mxu0 0.0
        %299 = vmatpush2.msra.mxu0 0.0
        %300 = vmatprep.subr.mxu0 0.0
        %301 = vmatpush2.msra.mxu0 0.0
        %302 = vmatprep.subr.mxu0 0.0
        %303 = vmatpush2.msra.mxu0 0.0
        %304 = vmatprep.subr.mxu0 0.0
        %305 = vmatpush2.msra.mxu0 0.0
        %306 = vmatprep.mubr.f32.mxu0 0.0
        %307 = vmatmul.mubr.f32.gmra.mxu0 %v235
        %v308 = vpop.f32.mrf.mxu0
        %v309 = vadd.f32 0.0, %v308
        %v310 = vpop.f32.mrf.mxu0
        %v311 = vadd.f32 0.0, %v310
        %312 = vdwg.mxu0
        %314 = vrot.lane.b32.xlu0 %v309, 112
        %v315 = vpop.permute.xlu0 %314
        %v317 = vmax.f32 %v309, %v315
        %vm318 = vcmask 130048
        %319 = vst.msk [vmem:[#allocation2] sm:$0xff] %vm318, %v317
        %320 = vrot.lane.b32.xlu0 %v309, 16
        %v321 = vpop.permute.xlu0 %320
        %v323 = vmax.f32 %v317, %v321
        %325 = vrot.lane.b32.xlu0 %v323, 112
        %v326 = vpop.permute.xlu0 %325
        %vm328 = vcmask 261248
        %329 = vst.msk [vmem:[#allocation2] sm:$0xff] %vm328, %v326
        %330 = vrot.lane.b32.xlu0 %v323, 96
        %v331 = vpop.permute.xlu0 %330
        %vm333 = vcmask 392448
        %334 = vst.msk [vmem:[#allocation2] sm:$0xff] %vm333, %v331
        %335 = vrot.lane.b32.xlu0 %v323, 80
        %v336 = vpop.permute.xlu0 %335
        %vm338 = vcmask 523648
        %339 = vst.msk [vmem:[#allocation2] sm:$0xff] %vm338, %v336
        %341 = vrot.lane.b32.xlu0 %v311, 112
        %v342 = vpop.permute.xlu0 %341
        %v344 = vmax.f32 %v311, %v342
        %v345 = vmax.f32 %v344, %v321
        %347 = vrot.lane.b32.xlu0 %v345, 64
        %v348 = vpop.permute.xlu0 %347
        %vm350 = vcmask 654848
        %351 = vst.msk [vmem:[#allocation2] sm:$0xff] %vm350, %v348
        %352 = vrot.lane.b32.xlu0 %v311, 16
        %v353 = vpop.permute.xlu0 %352
        %v355 = vmax.f32 %v344, %v353
        %357 = vrot.lane.b32.xlu0 %v355, 48
        %v358 = vpop.permute.xlu0 %357
        %vm360 = vcmask 786048
        %361 = vst.msk [vmem:[#allocation2] sm:$0xff] %vm360, %v358
        %362 = vrot.lane.b32.xlu0 %v355, 32
        %v363 = vpop.permute.xlu0 %362
        %vm365 = vcmask 917248
        %366 = vst.msk [vmem:[#allocation2] sm:$0xff] %vm365, %v363
        %367 = vrot.lane.b32.xlu0 %v355, 16
        %v368 = vpop.permute.xlu0 %367
        %vm370 = vcmask 1048448
        %371 = vst.msk [vmem:[#allocation2] sm:$0xff] %vm370, %v368
        %v372 = vld [vmem:[#allocation2] sm:$0xff]
        %373 = vmatprep.subr.mxu0 %v228
        %374 = vmatpush1.msra.mxu0 %v227
        %375 = vmatprep.subr.mxu0 %v226
        %376 = vmatpush1.msra.mxu0 %v225
        %377 = vmatprep.subr.mxu0 %v224
        %378 = vmatpush1.msra.mxu0 %v223
        %379 = vmatprep.subr.mxu0 %v222
        %380 = vmatpush1.msra.mxu0 %v221
        %381 = vmatprep.subr.mxu0 %v220
        %382 = vmatpush1.msra.mxu0 %v219
        %383 = vmatprep.subr.mxu0 %v218
        %384 = vmatpush1.msra.mxu0 %v217
        %385 = vmatprep.subr.mxu0 %v216
        %386 = vmatpush1.msra.mxu0 %v215
        %387 = vmatprep.subr.mxu0 %v214
        %388 = vmatpush1.msra.mxu0 %v213
        %389 = vmatprep.subr.mxu0 %v212
        %390 = vmatpush1.msra.mxu0 %v211
        %391 = vmatprep.subr.mxu0 %v210
        %392 = vmatpush1.msra.mxu0 %v209
        %393 = vmatprep.subr.mxu0 %v208
        %394 = vmatpush1.msra.mxu0 %v207
        %395 = vmatprep.subr.mxu0 %v206
        %396 = vmatpush1.msra.mxu0 %v205
        %397 = vmatprep.subr.mxu0 %v204
        %398 = vmatpush1.msra.mxu0 %v203
        %399 = vmatprep.subr.mxu0 %v202
        %400 = vmatpush1.msra.mxu0 %v201
        %401 = vmatprep.subr.mxu0 %v200
        %402 = vmatpush1.msra.mxu0 %v199
        %403 = vmatprep.subr.mxu0 %v198
        %404 = vmatpush1.msra.mxu0 %v197
        %405 = vmatprep.subr.mxu0 0.0
        %406 = vmatpush2.msra.mxu0 0.0
        %407 = vmatprep.subr.mxu0 0.0
        %408 = vmatpush2.msra.mxu0 0.0
        %409 = vmatprep.subr.mxu0 0.0
        %410 = vmatpush2.msra.mxu0 0.0
        %411 = vmatprep.subr.mxu0 0.0
        %412 = vmatpush2.msra.mxu0 0.0
        %413 = vmatprep.subr.mxu0 0.0
        %414 = vmatpush2.msra.mxu0 0.0
        %415 = vmatprep.subr.mxu0 0.0
        %416 = vmatpush2.msra.mxu0 0.0
        %417 = vmatprep.subr.mxu0 0.0
        %418 = vmatpush2.msra.mxu0 0.0
        %419 = vmatprep.subr.mxu0 0.0
        %420 = vmatpush2.msra.mxu0 0.0
        %421 = vmatprep.subr.mxu0 0.0
        %422 = vmatpush2.msra.mxu0 0.0
        %423 = vmatprep.subr.mxu0 0.0
        %424 = vmatpush2.msra.mxu0 0.0
        %425 = vmatprep.subr.mxu0 0.0
        %426 = vmatpush2.msra.mxu0 0.0
        %427 = vmatprep.subr.mxu0 0.0
        %428 = vmatpush2.msra.mxu0 0.0
        %429 = vmatprep.subr.mxu0 0.0
        %430 = vmatpush2.msra.mxu0 0.0
        %431 = vmatprep.subr.mxu0 0.0
        %432 = vmatpush2.msra.mxu0 0.0
        %433 = vmatprep.subr.mxu0 0.0
        %434 = vmatpush2.msra.mxu0 0.0
        %435 = vmatprep.subr.mxu0 0.0
        %436 = vmatpush2.msra.mxu0 0.0
        %437 = vmatprep.mubr.f32.mxu0 0.0
        %438 = vmatmul.mubr.f32.gmra.mxu0 %v372
        %v439 = vpop.f32.mrf.mxu0
        %v440 = vadd.f32 0.0, %v439
        %v441 = vpop.f32.mrf.mxu0
        %v442 = vadd.f32 0.0, %v441
        %443 = vdwg.mxu0
        %445 = vrot.lane.b32.xlu0 %v440, 64
        %v446 = vpop.permute.xlu0 %445
        %v448 = vmax.f32 %v440, %v446
        %v449 = vmax.f32 %v448, %v442
        %451 = vset.pattern.permute.xlu0 0
        %452 = vperm.xlu0 %451, %v229
        %v453 = vpop.permute.xlu0 %452
        %v455 = vadd.f32 %v449, %v453
        %vm456 = vcmask 523264
        %457 = vst.msk [vmem:[%s190] sm:$0xff] %vm456, %v455
        %s458 = sand.u32 %s115, 1
        %s459 = scalar_lea.sflag [#allocation4], %s458
        %s460 = sand.u32 %s115, 1
        %s461 = smul.addr %s460, 8
        %s462 = scalar_lea.vmem [#allocation3], %s461
        // Predicated region
        $region37: #{tpu_custom_call.1} parent=35 // pred_check
          %p463 = pneg %p125
        $region38: #{tpu_custom_call.1} parent=35 // pred_check_branch
          %465 = sbr.rel (%p463) target = $region40
        $region39: #{tpu_custom_call.1} parent=35 // pred_region
          %s467 = ssub.s32 128, 128
          %468 = vsyncadd %s459, %s467
          %s469 = smul.addr %s18, 128
          %s470 = scalar_lea.hbm %s4, %s469
          %s472 = sshll.u32 %s462, 4
          %s473 = int_to_ptr.vmem [resolvable:$true] %s472
          %475 = dma.vmem_to_hbm [thread:$0]  %s473, 128, %s470, %s459
        $region40: #{tpu_custom_call.1} parent=35 // pred_fallthru
          _
      $region36: #{tpu_custom_call.1} parent=5 // pred_fallthru
        _
      %p476 = scmp.le.s32.totalorder 2, %s13
      // Predicated region
      $region41: #{tpu_custom_call.1} parent=5 // pred_check
        %p477 = pneg %p476
      $region42: #{tpu_custom_call.1} parent=5 // pred_check_branch
        %479 = sbr.rel (%p477) target = $region44
      $region43: #{tpu_custom_call.1} parent=5 // pred_region
        %s480 = ssub.s32 %s13, 2
        // Predicated region
        $region45: #{tpu_custom_call.1} parent=43 // pred_check
          %p481 = pneg %p131
        $region46: #{tpu_custom_call.1} parent=43 // pred_check_branch
          %483 = sbr.rel (%p481) target = $region48
        $region47: #{tpu_custom_call.1} parent=43 // pred_region
          %s484 = sand.u32 %s116, 1
          %s485 = scalar_lea.sflag [#allocation4], %s484
          %s486 = sand.u32 %s116, 1
          %s487 = smul.addr %s486, 8
          %s488 = scalar_lea.vmem [#allocation3], %s487
          %489 = dma.done %s485, 128
        $region48: #{tpu_custom_call.1} parent=43 // pred_fallthru
          _
      $region44: #{tpu_custom_call.1} parent=5 // pred_fallthru
        _
    $region6: #{tpu_custom_call.1} parent=1 // loop_footer
      %s17 = sadd.s32 1, %s13
    $region7: #{tpu_custom_call.1} parent=1 // loop_footer_branch
      %12 = sbr.rel target = $region3
    $region8: #{tpu_custom_call.1} parent=1 // loop_exit
      _
    %490 = vsyncpa [#allocation4], 1
    %s491 = scalar_lea.sflag [#allocation4], 1
    %492 = vsyncpa %s491, 1

</llo_original>
